<compile_context>
chip_gen: v5e
topology: v5e:2x2
jax: 0.10.0
libtpu: 0.0.40
codegen_flags: <defaults>
</compile_context>

<pallas_src>
import jax
import jax.numpy as jnp
import numpy as np
from jax.experimental import pallas as pl
from jax.experimental.pallas import tpu as pltpu

K = 5          # Conv1d kernel size
LANE = 128     # TPU lane width
SUBLANE = 8    # f32 sublane width


def _cdiv(a, b):
    return -(-a // b)


def _round_up(v, m):
    return ((v + m - 1) // m) * m


def mycnn_kernel(x_ref, t_ref, bc_ref, wfc_ref, bfc_ref, out_ref):
    """One batch tile.

    x_ref   : (TB, E)        input rows (f32)
    t_ref   : (E, 2*P*C)     Toeplitz conv weight, cols = [even | odd] conv
                             positions, each block in (p, c) lane order
    bc_ref  : (1, P*C)       conv bias tiled over pool positions ((p, c) order)
    wfc_ref : (P*C, N_pad)   fc weight, rows in (p, c) order
    bfc_ref : (1, N_pad)     fc bias (zero padded)
    out_ref : (TB, N_pad)    logits (lane-dense, padded)
    """
    pc = wfc_ref.shape[0]

    # Conv1d(1->C, K) at both positions of every pool window: one MXU matmul.
    y = jnp.dot(x_ref[...], t_ref[...], preferred_element_type=jnp.float32)

    # MaxPool1d(2) + bias + ReLU as elementwise max of the lane-aligned halves.
    pooled = jnp.maximum(jnp.maximum(y[:, :pc], y[:, pc:]) + bc_ref[...], 0.0)

    # Fused flatten + Linear: (TB, P*C) @ (P*C, N_pad) MXU matmul + bias.
    out_ref[...] = (
        jnp.dot(pooled, wfc_ref[...], preferred_element_type=jnp.float32)
        + bfc_ref[...]
    )


def mycnn_forward(x, conv_w, conv_b, fc_w, fc_b, *, max_tile_b=512):
    """x: (B, E); conv_w: (C, 1, K); conv_b: (C,); fc_w: (N, C*P); fc_b: (N,)."""
    B, E = x.shape
    C = conv_w.shape[0]
    L = E - (K - 1)                  # valid conv output length
    P = (L - 2) // 2 + 1             # MaxPool1d(2) output length
    N = fc_w.shape[0]
    PC = P * C
    N_pad = _round_up(N, LANE)       # lane-dense padded output width

    # ---- batch tiling: sublane-aligned tiles, >=2 grid steps for v7x TCs ----
    min_tiles = 2 if B > 2 * SUBLANE else 1
    n_tiles = max(_cdiv(B, max_tile_b), min_tiles)
    tile_b = _round_up(_cdiv(B, n_tiles), SUBLANE)
    n_tiles = max(_cdiv(B, tile_b), 1)
    B_pad = n_tiles * tile_b

    xp = x.astype(jnp.float32)
    if B_pad != B:
        xp = jnp.pad(xp, ((0, B_pad - B), (0, 0)))

    # ---- parameter re-layout (pure JAX, outside the kernel) ----
    wc_kc = jnp.transpose(conv_w[:, 0, :], (1, 0)).astype(jnp.float32)   # (K, C)

    # Toeplitz/im2col conv weight T: (E, 2*P*C).
    #   even block: T[2p + k,     p*C + c] = w[c, 0, k]
    #   odd  block: T[2p + 1 + k, p*C + c] = w[c, 0, k]
    e_idx = jnp.arange(E)[:, None, None]
    p_idx = jnp.arange(P)[None, :, None]
    k_idx = jnp.arange(K)[None, None, :]
    s_even = (e_idx == 2 * p_idx + k_idx).astype(jnp.float32)            # (E, P, K)
    s_odd = (e_idx == 2 * p_idx + 1 + k_idx).astype(jnp.float32)         # (E, P, K)
    t_even = jnp.einsum('epk,kc->epc', s_even, wc_kc).reshape(E, PC)
    t_odd = jnp.einsum('epk,kc->epc', s_odd, wc_kc).reshape(E, PC)
    toep = jnp.concatenate([t_even, t_odd], axis=1)                      # (E, 2*PC)

    # Conv bias tiled to (p, c) lane order: bc_tiled[0, p*C + c] = conv_b[c].
    bc_tiled = jnp.tile(conv_b.reshape(1, C).astype(jnp.float32), (1, P))  # (1, PC)

    # PyTorch flattens (B, C, P) channel-major (index c*P + p); the kernel LHS
    # lane index is p*C + c, so permute fc_w accordingly and zero-pad N.
    wfc = jnp.transpose(fc_w.reshape(N, C, P), (2, 1, 0)).reshape(PC, N)
    wfc = jnp.pad(wfc, ((0, 0), (0, N_pad - N))).astype(jnp.float32)     # (PC, N_pad)
    bfc = jnp.pad(fc_b, (0, N_pad - N)).reshape(1, N_pad).astype(jnp.float32)

    row_spec = lambda w: pl.BlockSpec((tile_b, w), lambda i: (i, 0))
    full_spec = lambda a: pl.BlockSpec(a.shape, lambda i: (0, 0))  # resident

    out = pl.pallas_call(
        mycnn_kernel,
        out_shape=jax.ShapeDtypeStruct((B_pad, N_pad), jnp.float32),
        grid=(B_pad // tile_b,),
        in_specs=[row_spec(E), full_spec(toep), full_spec(bc_tiled),
                  full_spec(wfc), full_spec(bfc)],
        out_specs=row_spec(N_pad),
        compiler_params=pltpu.CompilerParams(
            dimension_semantics=("parallel",),
            vmem_limit_bytes=32 * 1024 * 1024),
    )(xp, toep, bc_tiled, wfc, bfc)
    return out[:B, :N]


def ref_forward(x, conv_w, conv_b, fc_w, fc_b):
    """Pure-JAX reference mirroring the PyTorch forward exactly."""
    B, E = x.shape
    C = conv_w.shape[0]
    L = E - (K - 1)
    P = (L - 2) // 2 + 1
    cols = jnp.stack([x[:, k:k + L] for k in range(K)], axis=-1)          # (B, L, K)
    y = jnp.einsum('blk,ck->bcl', cols, conv_w[:, 0, :]) + conv_b[None, :, None]
    y = jnp.maximum(y, 0.0)                                               # (B, C, L)
    yp = jnp.max(y[:, :, :2 * P].reshape(B, C, P, 2), axis=-1)            # (B, C, P)
    flat = yp.reshape(B, C * P)                                           # channel-major
    return flat @ fc_w.T + fc_b[None, :]


if __name__ == "__main__":
    # Small, module-consistent shapes: embedding_dim=32, num_classes=4, C=64.
    E, N, C = 32, 4, 64
    P = ((E - 4) - 2) // 2 + 1       # 14

    key = jax.random.PRNGKey(0)
    k1, k2, k3, k4, k5, k6 = jax.random.split(key, 6)
    conv_w = jax.random.normal(k2, (C, 1, K), jnp.float32) * 0.1
    conv_b = jax.random.normal(k3, (C,), jnp.float32) * 0.1
    fc_w = jax.random.normal(k4, (N, C * P), jnp.float32) * 0.05
    fc_b = jax.random.normal(k5, (N,), jnp.float32) * 0.05

    # Case 1: tiny batch (single grid step, batch padded to a sublane multiple).
    x1 = jax.random.normal(k1, (2, E), jnp.float32)
    out1 = jax.block_until_ready(mycnn_forward(x1, conv_w, conv_b, fc_w, fc_b))
    ref1 = jax.block_until_ready(ref_forward(x1, conv_w, conv_b, fc_w, fc_b))
    np.testing.assert_allclose(np.asarray(out1), np.asarray(ref1), rtol=2e-4, atol=2e-4)

    # Case 2: non-multiple batch with a multi-step grid (exercises tiling path).
    x2 = jax.random.normal(k6, (37, E), jnp.float32)
    out2 = jax.block_until_ready(
        mycnn_forward(x2, conv_w, conv_b, fc_w, fc_b, max_tile_b=16))
    ref2 = jax.block_until_ready(ref_forward(x2, conv_w, conv_b, fc_w, fc_b))
    np.testing.assert_allclose(np.asarray(out2), np.asarray(ref2), rtol=2e-4, atol=2e-4)

    print("KERNEL_OK")
</pallas_src>

<mosaic_0001>
module attributes {stable_mosaic.version = 11 : i64} {
  func.func @mycnn_kernel(%arg0: i32, %arg1: memref<8x32xf32, #tpu.memory_space<vmem>>, %arg2: memref<32x1792xf32, #tpu.memory_space<vmem>>, %arg3: memref<1x896xf32, #tpu.memory_space<vmem>>, %arg4: memref<896x128xf32, #tpu.memory_space<vmem>>, %arg5: memref<1x128xf32, #tpu.memory_space<vmem>>, %arg6: memref<8x128xf32, #tpu.memory_space<vmem>>) attributes {dimension_semantics = [#tpu.dimension_semantics<parallel>], iteration_bounds = array<i64: 1>, scalar_prefetch = 0 : i64, scratch_operands = 0 : i64, tpu.core_type = #tpu.core_type<tc>, window_params = [{transform_indices = @transform_0, window_bounds = array<i64: 8, 32>}, {pipeline_mode = #tpu.pipeline_mode<synchronous>, transform_indices = @transform_1, window_bounds = array<i64: 32, 1792>}, {pipeline_mode = #tpu.pipeline_mode<synchronous>, transform_indices = @transform_2, window_bounds = array<i64: 1, 896>}, {pipeline_mode = #tpu.pipeline_mode<synchronous>, transform_indices = @transform_3, window_bounds = array<i64: 896, 128>}, {pipeline_mode = #tpu.pipeline_mode<synchronous>, transform_indices = @transform_4, window_bounds = array<i64: 1, 128>}, {transform_indices = @transform_5, window_bounds = array<i64: 8, 128>}]} {
    %c0 = arith.constant 0 : index
    %c0_0 = arith.constant 0 : index
    %0 = vector.load %arg1[%c0, %c0_0] : memref<8x32xf32, #tpu.memory_space<vmem>>, vector<8x32xf32>
    %c0_1 = arith.constant 0 : index
    %c0_2 = arith.constant 0 : index
    %1 = vector.load %arg2[%c0_1, %c0_2] : memref<32x1792xf32, #tpu.memory_space<vmem>>, vector<32x1792xf32>
    %cst = arith.constant dense<0.000000e+00> : vector<8x1792xf32>
    %2 = tpu.matmul %0, %1, %cst {dimension_numbers = #tpu.dot_dimension_numbers<[1], [0], [0], [1], [0, 0, 1, 1], [], []>} : vector<8x32xf32>, vector<32x1792xf32>, vector<8x1792xf32> -> vector<8x1792xf32>
    %3 = vector.extract_strided_slice %2 {offsets = [0, 0], sizes = [8, 896], strides = [1, 1]} : vector<8x1792xf32> to vector<8x896xf32>
    %4 = vector.extract_strided_slice %2 {offsets = [0, 896], sizes = [8, 896], strides = [1, 1]} : vector<8x1792xf32> to vector<8x896xf32>
    %5 = arith.maximumf %3, %4 : vector<8x896xf32>
    %c0_3 = arith.constant 0 : index
    %c0_4 = arith.constant 0 : index
    %6 = vector.load %arg3[%c0_3, %c0_4] : memref<1x896xf32, #tpu.memory_space<vmem>>, vector<1x896xf32>
    %7 = vector.broadcast %6 : vector<1x896xf32> to vector<8x896xf32>
    %8 = arith.addf %5, %7 : vector<8x896xf32>
    %cst_5 = arith.constant 0.000000e+00 : f32
    %9 = vector.broadcast %cst_5 : f32 to vector<8x896xf32>
    %10 = arith.maximumf %8, %9 : vector<8x896xf32>
    %c0_6 = arith.constant 0 : index
    %c0_7 = arith.constant 0 : index
    %11 = vector.load %arg4[%c0_6, %c0_7] : memref<896x128xf32, #tpu.memory_space<vmem>>, vector<896x128xf32>
    %cst_8 = arith.constant dense<0.000000e+00> : vector<8x128xf32>
    %12 = tpu.matmul %10, %11, %cst_8 {dimension_numbers = #tpu.dot_dimension_numbers<[1], [0], [0], [1], [0, 0, 1, 1], [], []>} : vector<8x896xf32>, vector<896x128xf32>, vector<8x128xf32> -> vector<8x128xf32>
    %c0_9 = arith.constant 0 : index
    %c0_10 = arith.constant 0 : index
    %13 = vector.load %arg5[%c0_9, %c0_10] : memref<1x128xf32, #tpu.memory_space<vmem>>, vector<1x128xf32>
    %14 = vector.broadcast %13 : vector<1x128xf32> to vector<8x128xf32>
    %15 = arith.addf %12, %14 : vector<8x128xf32>
    %c0_11 = arith.constant 0 : index
    %c0_12 = arith.constant 0 : index
    %16 = vector.load %arg6[%c0_11, %c0_12] : memref<8x128xf32, #tpu.memory_space<vmem>>, vector<8x128xf32>
    tpu.vector_store %arg6[%c0_11, %c0_12], %15 {strides = array<i32>} : memref<8x128xf32, #tpu.memory_space<vmem>>, vector<8x128xf32>,
    return
  }
  func.func @transform_0(%arg0: i32) -> (i32, i32) {
    %c0_i32 = arith.constant 0 : i32
    %c0_i32_0 = arith.constant 0 : i32
    return %arg0, %c0_i32 : i32, i32
  }
  func.func @transform_1(%arg0: i32) -> (i32, i32) {
    %c0_i32 = arith.constant 0 : i32
    %c0_i32_0 = arith.constant 0 : i32
    %c0_i32_1 = arith.constant 0 : i32
    return %c0_i32, %c0_i32_0 : i32, i32
  }
  func.func @transform_2(%arg0: i32) -> (i32, i32) {
    %c0_i32 = arith.constant 0 : i32
    %c0_i32_0 = arith.constant 0 : i32
    %c0_i32_1 = arith.constant 0 : i32
    return %c0_i32, %c0_i32_0 : i32, i32
  }
  func.func @transform_3(%arg0: i32) -> (i32, i32) {
    %c0_i32 = arith.constant 0 : i32
    %c0_i32_0 = arith.constant 0 : i32
    %c0_i32_1 = arith.constant 0 : i32
    return %c0_i32, %c0_i32_0 : i32, i32
  }
  func.func @transform_4(%arg0: i32) -> (i32, i32) {
    %c0_i32 = arith.constant 0 : i32
    %c0_i32_0 = arith.constant 0 : i32
    %c0_i32_1 = arith.constant 0 : i32
    return %c0_i32, %c0_i32_0 : i32, i32
  }
  func.func @transform_5(%arg0: i32) -> (i32, i32) {
    %c0_i32 = arith.constant 0 : i32
    %c0_i32_0 = arith.constant 0 : i32
    return %arg0, %c0_i32 : i32, i32
  }
}

</mosaic_0001>

<llo_original>
// kernel: tpu_custom_call.1
$region0: #{tpu_custom_call.1}
  #allocation0 [shape = 'u32[]', space=smem, size = 0x4, offset = 0x4, fixed_abs, tag = 'smem constant byte address 0x4 - core index']
  #allocation1 [shape = 'u32[72,128]{1,0:T(1,128)}', space=vmem, size = 0x9000, scoped, tag = 'internal scratch']
  %s0 = inlined_call_operand.hbm [shape: f32[8,32], index: 0, kind: input, shape index: {}]
  %s1 = inlined_call_operand.hbm [shape: f32[32,1792], index: 1, kind: input, shape index: {}]
  %s2 = inlined_call_operand.hbm [shape: f32[1,896], index: 2, kind: input, shape index: {}]
  %s3 = inlined_call_operand.hbm [shape: f32[896,128], index: 3, kind: input, shape index: {}]
  %s4 = inlined_call_operand.vmem [shape: f32[1,128], index: 4, kind: input, shape index: {}]
  %s5 = inlined_call_operand.hbm [shape: f32[8,128], index: 5, kind: output, shape index: {}]
  %s6 = sld [smem:[#allocation0]]
  $region46: #{tpu_custom_call.1} parent=0
    _
  %s8 = ssub.s32 1, %s6
  %s9 = scalar_select 0, %s8, %s6
  $region1: #{tpu_custom_call.1} parent=0
    #allocation2 [shape = 'u8[4096]{0}', space=vmem, size = 0x1000, scoped, tag = 'input window, operand 0, single buffered']
    #allocation3 [shape = 's32[1]{0}', space=sflag, size = 0x4, scoped, tag = 'scoped memory for tpu_custom_call.1']
    #allocation4 [shape = 's32[1]{0}', space=sflag, size = 0x4, scoped, tag = 'scoped memory for tpu_custom_call.1']
    #allocation5 [shape = 'u8[229376]{0}', space=vmem, size = 0x38000, scoped, tag = 'input window, operand 1, single buffered']
    #allocation6 [shape = 's32[1]{0}', space=sflag, size = 0x4, scoped, tag = 'scoped memory for tpu_custom_call.1']
    #allocation7 [shape = 'u8[3584]{0}', space=vmem, size = 0x1000, scoped, tag = 'input window, operand 2, single buffered']
    #allocation8 [shape = 'u8[458752]{0}', space=vmem, size = 0x70000, scoped, tag = 'input window, operand 3, single buffered']
    #allocation9 [shape = 's32[1]{0}', space=sflag, size = 0x4, scoped, tag = 'scoped memory for tpu_custom_call.1']
    #allocation10 [shape = 'u8[4096]{0}', space=vmem, size = 0x1000, scoped, tag = 'output window, operand 0, single buffered']
    %10 = vsyncpa [#allocation3], 0
    %11 = vsyncpa [#allocation6], 0
    %12 = vsyncpa [#allocation9], 0
    %13 = vsyncpa [#allocation4], 0
    // Predicated region
    $region2: #{tpu_custom_call.1} parent=1 // pred_check
      _
    $region3: #{tpu_custom_call.1} parent=1 // pred_check_branch
      %15 = sbr.rel (0) target = $region5
    $region4: #{tpu_custom_call.1} parent=1 // pred_region
      %17 = vsyncadd [#allocation3], 0
      %s19 = sshll.u32 %s0, 4
      %s20 = int_to_ptr.hbm [resolvable:$true] %s19
      %s21 = sshll.u32 [#allocation2], 4
      %s22 = int_to_ptr.vmem [resolvable:$true] %s21
      %24 = dma.hbm_to_vmem [thread:$0]  %s20, 128, %s22, [#allocation3]
    $region5: #{tpu_custom_call.1} parent=1 // pred_fallthru
      _
    // Predicated region
    $region6: #{tpu_custom_call.1} parent=1 // pred_check
      _
    $region7: #{tpu_custom_call.1} parent=1 // pred_check_branch
      %26 = sbr.rel (0) target = $region9
    $region8: #{tpu_custom_call.1} parent=1 // pred_region
      %28 = vsyncadd [#allocation6], 0
      %s29 = sshll.u32 %s1, 4
      %s30 = int_to_ptr.hbm [resolvable:$true] %s29
      %s31 = sshll.u32 [#allocation5], 4
      %s32 = int_to_ptr.vmem [resolvable:$true] %s31
      %37 = dma.hbm_to_vmem [thread:$0]  %s30, 7168, %s32, [#allocation6], 1792, 1792, 112
    $region9: #{tpu_custom_call.1} parent=1 // pred_fallthru
      _
    // Predicated region
    $region10: #{tpu_custom_call.1} parent=1 // pred_check
      _
    $region11: #{tpu_custom_call.1} parent=1 // pred_check_branch
      %39 = sbr.rel (0) target = $region13
    $region12: #{tpu_custom_call.1} parent=1 // pred_region
      %41 = vsyncadd [#allocation6], 0
      %s43 = sshll.u32 %s2, 4
      %s44 = int_to_ptr.hbm [resolvable:$true] %s43
      %s45 = sshll.u32 [#allocation7], 4
      %s46 = int_to_ptr.vmem [resolvable:$true] %s45
      %48 = dma.hbm_to_vmem [thread:$0]  %s44, 112, %s46, [#allocation6]
    $region13: #{tpu_custom_call.1} parent=1 // pred_fallthru
      _
    // Predicated region
    $region14: #{tpu_custom_call.1} parent=1 // pred_check
      _
    $region15: #{tpu_custom_call.1} parent=1 // pred_check_branch
      %50 = sbr.rel (0) target = $region17
    $region16: #{tpu_custom_call.1} parent=1 // pred_region
      %52 = vsyncadd [#allocation9], 0
      %s53 = sshll.u32 %s3, 4
      %s54 = int_to_ptr.hbm [resolvable:$true] %s53
      %s55 = sshll.u32 [#allocation8], 4
      %s56 = int_to_ptr.vmem [resolvable:$true] %s55
      %61 = dma.hbm_to_vmem [thread:$0]  %s54, 14336, %s56, [#allocation9], 128, 128, 8
    $region17: #{tpu_custom_call.1} parent=1 // pred_fallthru
      _
    // Predicated region
    $region18: #{tpu_custom_call.1} parent=1 // pred_check
      _
    $region19: #{tpu_custom_call.1} parent=1 // pred_check_branch
      %63 = sbr.rel (0) target = $region21
    $region20: #{tpu_custom_call.1} parent=1 // pred_region
      _
    $region21: #{tpu_custom_call.1} parent=1 // pred_fallthru
      _
    // Predicated region
    $region22: #{tpu_custom_call.1} parent=1 // pred_check
      _
    $region23: #{tpu_custom_call.1} parent=1 // pred_check_branch
      %65 = sbr.rel (0) target = $region25
    $region24: #{tpu_custom_call.1} parent=1 // pred_region
      %67 = dma.done [#allocation3], 128
    $region25: #{tpu_custom_call.1} parent=1 // pred_fallthru
      _
    // Predicated region
    $region26: #{tpu_custom_call.1} parent=1 // pred_check
      _
    $region27: #{tpu_custom_call.1} parent=1 // pred_check_branch
      %69 = sbr.rel (0) target = $region29
    $region28: #{tpu_custom_call.1} parent=1 // pred_region
      %71 = dma.done [#allocation6], 7168
    $region29: #{tpu_custom_call.1} parent=1 // pred_fallthru
      _
    // Predicated region
    $region30: #{tpu_custom_call.1} parent=1 // pred_check
      _
    $region31: #{tpu_custom_call.1} parent=1 // pred_check_branch
      %73 = sbr.rel (0) target = $region33
    $region32: #{tpu_custom_call.1} parent=1 // pred_region
      %75 = dma.done [#allocation6], 112
    $region33: #{tpu_custom_call.1} parent=1 // pred_fallthru
      _
    // Predicated region
    $region34: #{tpu_custom_call.1} parent=1 // pred_check
      _
    $region35: #{tpu_custom_call.1} parent=1 // pred_check_branch
      %77 = sbr.rel (0) target = $region37
    $region36: #{tpu_custom_call.1} parent=1 // pred_region
      %79 = dma.done [#allocation9], 14336
    $region37: #{tpu_custom_call.1} parent=1 // pred_fallthru
      _
    %v80 = vld [vmem:[#allocation2] sm:$0xff]
    %v81 = vld [vmem:[#allocation5] sm:$0xff]
    %v82 = vld [vmem:[#allocation5 + $0x8] sm:$0xff]
    %v83 = vld [vmem:[#allocation5 + $0x10] sm:$0xff]
    %v84 = vld [vmem:[#allocation5 + $0x18] sm:$0xff]
    %v85 = vld [vmem:[#allocation5 + $0x20] sm:$0xff]
    %v86 = vld [vmem:[#allocation5 + $0x28] sm:$0xff]
    %v87 = vld [vmem:[#allocation5 + $0x30] sm:$0xff]
    %v88 = vld [vmem:[#allocation5 + $0x38] sm:$0xff]
    %v89 = vld [vmem:[#allocation5 + $0x40] sm:$0xff]
    %v90 = vld [vmem:[#allocation5 + $0x48] sm:$0xff]
    %v91 = vld [vmem:[#allocation5 + $0x50] sm:$0xff]
    %v92 = vld [vmem:[#allocation5 + $0x58] sm:$0xff]
    %v93 = vld [vmem:[#allocation5 + $0x60] sm:$0xff]
    %v94 = vld [vmem:[#allocation5 + $0x68] sm:$0xff]
    %v95 = vld [vmem:[#allocation5 + $0x70] sm:$0xff]
    %v96 = vld [vmem:[#allocation5 + $0x78] sm:$0xff]
    %v97 = vld [vmem:[#allocation5 + $0x80] sm:$0xff]
    %v98 = vld [vmem:[#allocation5 + $0x88] sm:$0xff]
    %v99 = vld [vmem:[#allocation5 + $0x90] sm:$0xff]
    %v100 = vld [vmem:[#allocation5 + $0x98] sm:$0xff]
    %v101 = vld [vmem:[#allocation5 + $0xa0] sm:$0xff]
    %v102 = vld [vmem:[#allocation5 + $0xa8] sm:$0xff]
    %v103 = vld [vmem:[#allocation5 + $0xb0] sm:$0xff]
    %v104 = vld [vmem:[#allocation5 + $0xb8] sm:$0xff]
    %v105 = vld [vmem:[#allocation5 + $0xc0] sm:$0xff]
    %v106 = vld [vmem:[#allocation5 + $0xc8] sm:$0xff]
    %v107 = vld [vmem:[#allocation5 + $0xd0] sm:$0xff]
    %v108 = vld [vmem:[#allocation5 + $0xd8] sm:$0xff]
    %v109 = vld [vmem:[#allocation5 + $0xe0] sm:$0xff]
    %v110 = vld [vmem:[#allocation5 + $0xe8] sm:$0xff]
    %v111 = vld [vmem:[#allocation5 + $0xf0] sm:$0xff]
    %v112 = vld [vmem:[#allocation5 + $0xf8] sm:$0xff]
    %v113 = vld [vmem:[#allocation5 + $0x100] sm:$0xff]
    %v114 = vld [vmem:[#allocation5 + $0x108] sm:$0xff]
    %v115 = vld [vmem:[#allocation5 + $0x110] sm:$0xff]
    %v116 = vld [vmem:[#allocation5 + $0x118] sm:$0xff]
    %v117 = vld [vmem:[#allocation5 + $0x120] sm:$0xff]
    %v118 = vld [vmem:[#allocation5 + $0x128] sm:$0xff]
    %v119 = vld [vmem:[#allocation5 + $0x130] sm:$0xff]
    %v120 = vld [vmem:[#allocation5 + $0x138] sm:$0xff]
    %v121 = vld [vmem:[#allocation5 + $0x140] sm:$0xff]
    %v122 = vld [vmem:[#allocation5 + $0x148] sm:$0xff]
    %v123 = vld [vmem:[#allocation5 + $0x150] sm:$0xff]
    %v124 = vld [vmem:[#allocation5 + $0x158] sm:$0xff]
    %v125 = vld [vmem:[#allocation5 + $0x160] sm:$0xff]
    %v126 = vld [vmem:[#allocation5 + $0x168] sm:$0xff]
    %v127 = vld [vmem:[#allocation5 + $0x170] sm:$0xff]
    %v128 = vld [vmem:[#allocation5 + $0x178] sm:$0xff]
    %v129 = vld [vmem:[#allocation5 + $0x180] sm:$0xff]
    %v130 = vld [vmem:[#allocation5 + $0x188] sm:$0xff]
    %v131 = vld [vmem:[#allocation5 + $0x190] sm:$0xff]
    %v132 = vld [vmem:[#allocation5 + $0x198] sm:$0xff]
    %v133 = vld [vmem:[#allocation5 + $0x1a0] sm:$0xff]
    %v134 = vld [vmem:[#allocation5 + $0x1a8] sm:$0xff]
    %v135 = vld [vmem:[#allocation5 + $0x1b0] sm:$0xff]
    %v136 = vld [vmem:[#allocation5 + $0x1b8] sm:$0xff]
    %vm137 = vcmask 261120
    %v139 = vsel %vm137, %v80, 0
    %141 = vmatpush.msra.mxu0 0.0
    %142 = vmatpush.msra.mxu0 0.0
    %143 = vmatpush.msra.mxu0 0.0
    %144 = vmatpush.msra.mxu0 0.0
    %145 = vmatpush.msra.mxu0 0.0
    %146 = vmatpush.msra.mxu0 0.0
    %147 = vmatpush.msra.mxu0 0.0
    %148 = vmatpush.msra.mxu0 0.0
    %149 = vmatpush.msra.mxu0 0.0
    %150 = vmatpush.msra.mxu0 0.0
    %151 = vmatpush.msra.mxu0 0.0
    %152 = vmatpush.msra.mxu0 0.0
    %153 = vmatpush.msra.mxu0 %v123
    %154 = vmatpush.msra.mxu0 %v109
    %155 = vmatpush.msra.mxu0 %v95
    %156 = vmatpush.msra.mxu0 %v81
    %157 = vmatmul.f32.gmra.mxu0 %v139
    %v158 = vpop.f32.mrf.mxu0
    %v159 = vadd.f32 0.0, %v158
    %160 = vdwg.mxu0
    %161 = vmatpush.msra.mxu0 0.0
    %162 = vmatpush.msra.mxu0 0.0
    %163 = vmatpush.msra.mxu0 0.0
    %164 = vmatpush.msra.mxu0 0.0
    %165 = vmatpush.msra.mxu0 0.0
    %166 = vmatpush.msra.mxu0 0.0
    %167 = vmatpush.msra.mxu0 0.0
    %168 = vmatpush.msra.mxu0 0.0
    %169 = vmatpush.msra.mxu0 0.0
    %170 = vmatpush.msra.mxu0 0.0
    %171 = vmatpush.msra.mxu0 0.0
    %172 = vmatpush.msra.mxu0 0.0
    %173 = vmatpush.msra.mxu0 %v124
    %174 = vmatpush.msra.mxu0 %v110
    %175 = vmatpush.msra.mxu0 %v96
    %176 = vmatpush.msra.mxu0 %v82
    %177 = vmatmul.f32.gmra.mxu0 %v139
    %v178 = vpop.f32.mrf.mxu0
    %v179 = vadd.f32 0.0, %v178
    %180 = vdwg.mxu0
    %181 = vmatpush.msra.mxu0 0.0
    %182 = vmatpush.msra.mxu0 0.0
    %183 = vmatpush.msra.mxu0 0.0
    %184 = vmatpush.msra.mxu0 0.0
    %185 = vmatpush.msra.mxu0 0.0
    %186 = vmatpush.msra.mxu0 0.0
    %187 = vmatpush.msra.mxu0 0.0
    %188 = vmatpush.msra.mxu0 0.0
    %189 = vmatpush.msra.mxu0 0.0
    %190 = vmatpush.msra.mxu0 0.0
    %191 = vmatpush.msra.mxu0 0.0
    %192 = vmatpush.msra.mxu0 0.0
    %193 = vmatpush.msra.mxu0 %v125
    %194 = vmatpush.msra.mxu0 %v111
    %195 = vmatpush.msra.mxu0 %v97
    %196 = vmatpush.msra.mxu0 %v83
    %197 = vmatmul.f32.gmra.mxu0 %v139
    %v198 = vpop.f32.mrf.mxu0
    %v199 = vadd.f32 0.0, %v198
    %200 = vdwg.mxu0
    %201 = vmatpush.msra.mxu0 0.0
    %202 = vmatpush.msra.mxu0 0.0
    %203 = vmatpush.msra.mxu0 0.0
    %204 = vmatpush.msra.mxu0 0.0
    %205 = vmatpush.msra.mxu0 0.0
    %206 = vmatpush.msra.mxu0 0.0
    %207 = vmatpush.msra.mxu0 0.0
    %208 = vmatpush.msra.mxu0 0.0
    %209 = vmatpush.msra.mxu0 0.0
    %210 = vmatpush.msra.mxu0 0.0
    %211 = vmatpush.msra.mxu0 0.0
    %212 = vmatpush.msra.mxu0 0.0
    %213 = vmatpush.msra.mxu0 %v126
    %214 = vmatpush.msra.mxu0 %v112
    %215 = vmatpush.msra.mxu0 %v98
    %216 = vmatpush.msra.mxu0 %v84
    %217 = vmatmul.f32.gmra.mxu0 %v139
    %v218 = vpop.f32.mrf.mxu0
    %v219 = vadd.f32 0.0, %v218
    %220 = vdwg.mxu0
    %221 = vmatpush.msra.mxu0 0.0
    %222 = vmatpush.msra.mxu0 0.0
    %223 = vmatpush.msra.mxu0 0.0
    %224 = vmatpush.msra.mxu0 0.0
    %225 = vmatpush.msra.mxu0 0.0
    %226 = vmatpush.msra.mxu0 0.0
    %227 = vmatpush.msra.mxu0 0.0
    %228 = vmatpush.msra.mxu0 0.0
    %229 = vmatpush.msra.mxu0 0.0
    %230 = vmatpush.msra.mxu0 0.0
    %231 = vmatpush.msra.mxu0 0.0
    %232 = vmatpush.msra.mxu0 0.0
    %233 = vmatpush.msra.mxu0 %v127
    %234 = vmatpush.msra.mxu0 %v113
    %235 = vmatpush.msra.mxu0 %v99
    %236 = vmatpush.msra.mxu0 %v85
    %237 = vmatmul.f32.gmra.mxu0 %v139
    %v238 = vpop.f32.mrf.mxu0
    %v239 = vadd.f32 0.0, %v238
    %240 = vdwg.mxu0
    %241 = vmatpush.msra.mxu0 0.0
    %242 = vmatpush.msra.mxu0 0.0
    %243 = vmatpush.msra.mxu0 0.0
    %244 = vmatpush.msra.mxu0 0.0
    %245 = vmatpush.msra.mxu0 0.0
    %246 = vmatpush.msra.mxu0 0.0
    %247 = vmatpush.msra.mxu0 0.0
    %248 = vmatpush.msra.mxu0 0.0
    %249 = vmatpush.msra.mxu0 0.0
    %250 = vmatpush.msra.mxu0 0.0
    %251 = vmatpush.msra.mxu0 0.0
    %252 = vmatpush.msra.mxu0 0.0
    %253 = vmatpush.msra.mxu0 %v128
    %254 = vmatpush.msra.mxu0 %v114
    %255 = vmatpush.msra.mxu0 %v100
    %256 = vmatpush.msra.mxu0 %v86
    %257 = vmatmul.f32.gmra.mxu0 %v139
    %v258 = vpop.f32.mrf.mxu0
    %v259 = vadd.f32 0.0, %v258
    %260 = vdwg.mxu0
    %261 = vmatpush.msra.mxu0 0.0
    %262 = vmatpush.msra.mxu0 0.0
    %263 = vmatpush.msra.mxu0 0.0
    %264 = vmatpush.msra.mxu0 0.0
    %265 = vmatpush.msra.mxu0 0.0
    %266 = vmatpush.msra.mxu0 0.0
    %267 = vmatpush.msra.mxu0 0.0
    %268 = vmatpush.msra.mxu0 0.0
    %269 = vmatpush.msra.mxu0 0.0
    %270 = vmatpush.msra.mxu0 0.0
    %271 = vmatpush.msra.mxu0 0.0
    %272 = vmatpush.msra.mxu0 0.0
    %273 = vmatpush.msra.mxu0 %v129
    %274 = vmatpush.msra.mxu0 %v115
    %275 = vmatpush.msra.mxu0 %v101
    %276 = vmatpush.msra.mxu0 %v87
    %277 = vmatmul.f32.gmra.mxu0 %v139
    %v278 = vpop.f32.mrf.mxu0
    %v279 = vadd.f32 0.0, %v278
    %280 = vdwg.mxu0
    %281 = vmatpush.msra.mxu0 0.0
    %282 = vmatpush.msra.mxu0 0.0
    %283 = vmatpush.msra.mxu0 0.0
    %284 = vmatpush.msra.mxu0 0.0
    %285 = vmatpush.msra.mxu0 0.0
    %286 = vmatpush.msra.mxu0 0.0
    %287 = vmatpush.msra.mxu0 0.0
    %288 = vmatpush.msra.mxu0 0.0
    %289 = vmatpush.msra.mxu0 0.0
    %290 = vmatpush.msra.mxu0 0.0
    %291 = vmatpush.msra.mxu0 0.0
    %292 = vmatpush.msra.mxu0 0.0
    %293 = vmatpush.msra.mxu0 %v130
    %294 = vmatpush.msra.mxu0 %v116
    %295 = vmatpush.msra.mxu0 %v102
    %296 = vmatpush.msra.mxu0 %v88
    %297 = vmatmul.f32.gmra.mxu0 %v139
    %v298 = vpop.f32.mrf.mxu0
    %v299 = vadd.f32 0.0, %v298
    %300 = vdwg.mxu0
    %301 = vmatpush.msra.mxu0 0.0
    %302 = vmatpush.msra.mxu0 0.0
    %303 = vmatpush.msra.mxu0 0.0
    %304 = vmatpush.msra.mxu0 0.0
    %305 = vmatpush.msra.mxu0 0.0
    %306 = vmatpush.msra.mxu0 0.0
    %307 = vmatpush.msra.mxu0 0.0
    %308 = vmatpush.msra.mxu0 0.0
    %309 = vmatpush.msra.mxu0 0.0
    %310 = vmatpush.msra.mxu0 0.0
    %311 = vmatpush.msra.mxu0 0.0
    %312 = vmatpush.msra.mxu0 0.0
    %313 = vmatpush.msra.mxu0 %v131
    %314 = vmatpush.msra.mxu0 %v117
    %315 = vmatpush.msra.mxu0 %v103
    %316 = vmatpush.msra.mxu0 %v89
    %317 = vmatmul.f32.gmra.mxu0 %v139
    %v318 = vpop.f32.mrf.mxu0
    %v319 = vadd.f32 0.0, %v318
    %320 = vdwg.mxu0
    %321 = vmatpush.msra.mxu0 0.0
    %322 = vmatpush.msra.mxu0 0.0
    %323 = vmatpush.msra.mxu0 0.0
    %324 = vmatpush.msra.mxu0 0.0
    %325 = vmatpush.msra.mxu0 0.0
    %326 = vmatpush.msra.mxu0 0.0
    %327 = vmatpush.msra.mxu0 0.0
    %328 = vmatpush.msra.mxu0 0.0
    %329 = vmatpush.msra.mxu0 0.0
    %330 = vmatpush.msra.mxu0 0.0
    %331 = vmatpush.msra.mxu0 0.0
    %332 = vmatpush.msra.mxu0 0.0
    %333 = vmatpush.msra.mxu0 %v132
    %334 = vmatpush.msra.mxu0 %v118
    %335 = vmatpush.msra.mxu0 %v104
    %336 = vmatpush.msra.mxu0 %v90
    %337 = vmatmul.f32.gmra.mxu0 %v139
    %v338 = vpop.f32.mrf.mxu0
    %v339 = vadd.f32 0.0, %v338
    %340 = vdwg.mxu0
    %341 = vmatpush.msra.mxu0 0.0
    %342 = vmatpush.msra.mxu0 0.0
    %343 = vmatpush.msra.mxu0 0.0
    %344 = vmatpush.msra.mxu0 0.0
    %345 = vmatpush.msra.mxu0 0.0
    %346 = vmatpush.msra.mxu0 0.0
    %347 = vmatpush.msra.mxu0 0.0
    %348 = vmatpush.msra.mxu0 0.0
    %349 = vmatpush.msra.mxu0 0.0
    %350 = vmatpush.msra.mxu0 0.0
    %351 = vmatpush.msra.mxu0 0.0
    %352 = vmatpush.msra.mxu0 0.0
    %353 = vmatpush.msra.mxu0 %v133
    %354 = vmatpush.msra.mxu0 %v119
    %355 = vmatpush.msra.mxu0 %v105
    %356 = vmatpush.msra.mxu0 %v91
    %357 = vmatmul.f32.gmra.mxu0 %v139
    %v358 = vpop.f32.mrf.mxu0
    %v359 = vadd.f32 0.0, %v358
    %360 = vdwg.mxu0
    %361 = vmatpush.msra.mxu0 0.0
    %362 = vmatpush.msra.mxu0 0.0
    %363 = vmatpush.msra.mxu0 0.0
    %364 = vmatpush.msra.mxu0 0.0
    %365 = vmatpush.msra.mxu0 0.0
    %366 = vmatpush.msra.mxu0 0.0
    %367 = vmatpush.msra.mxu0 0.0
    %368 = vmatpush.msra.mxu0 0.0
    %369 = vmatpush.msra.mxu0 0.0
    %370 = vmatpush.msra.mxu0 0.0
    %371 = vmatpush.msra.mxu0 0.0
    %372 = vmatpush.msra.mxu0 0.0
    %373 = vmatpush.msra.mxu0 %v134
    %374 = vmatpush.msra.mxu0 %v120
    %375 = vmatpush.msra.mxu0 %v106
    %376 = vmatpush.msra.mxu0 %v92
    %377 = vmatmul.f32.gmra.mxu0 %v139
    %v378 = vpop.f32.mrf.mxu0
    %v379 = vadd.f32 0.0, %v378
    %380 = vdwg.mxu0
    %381 = vmatpush.msra.mxu0 0.0
    %382 = vmatpush.msra.mxu0 0.0
    %383 = vmatpush.msra.mxu0 0.0
    %384 = vmatpush.msra.mxu0 0.0
    %385 = vmatpush.msra.mxu0 0.0
    %386 = vmatpush.msra.mxu0 0.0
    %387 = vmatpush.msra.mxu0 0.0
    %388 = vmatpush.msra.mxu0 0.0
    %389 = vmatpush.msra.mxu0 0.0
    %390 = vmatpush.msra.mxu0 0.0
    %391 = vmatpush.msra.mxu0 0.0
    %392 = vmatpush.msra.mxu0 0.0
    %393 = vmatpush.msra.mxu0 %v135
    %394 = vmatpush.msra.mxu0 %v121
    %395 = vmatpush.msra.mxu0 %v107
    %396 = vmatpush.msra.mxu0 %v93
    %397 = vmatmul.f32.gmra.mxu0 %v139
    %v398 = vpop.f32.mrf.mxu0
    %v399 = vadd.f32 0.0, %v398
    %400 = vdwg.mxu0
    %401 = vmatpush.msra.mxu0 0.0
    %402 = vmatpush.msra.mxu0 0.0
    %403 = vmatpush.msra.mxu0 0.0
    %404 = vmatpush.msra.mxu0 0.0
    %405 = vmatpush.msra.mxu0 0.0
    %406 = vmatpush.msra.mxu0 0.0
    %407 = vmatpush.msra.mxu0 0.0
    %408 = vmatpush.msra.mxu0 0.0
    %409 = vmatpush.msra.mxu0 0.0
    %410 = vmatpush.msra.mxu0 0.0
    %411 = vmatpush.msra.mxu0 0.0
    %412 = vmatpush.msra.mxu0 0.0
    %413 = vmatpush.msra.mxu0 %v136
    %414 = vmatpush.msra.mxu0 %v122
    %415 = vmatpush.msra.mxu0 %v108
    %416 = vmatpush.msra.mxu0 %v94
    %417 = vmatmul.f32.gmra.mxu0 %v139
    %v418 = vpop.f32.mrf.mxu0
    %v419 = vadd.f32 0.0, %v418
    %420 = vdwg.mxu0
    %v421 = vmax.f32 %v159, %v299
    %v422 = vmax.f32 %v179, %v319
    %v423 = vmax.f32 %v199, %v339
    %v424 = vmax.f32 %v219, %v359
    %v425 = vmax.f32 %v239, %v379
    %v426 = vmax.f32 %v259, %v399
    %v427 = vmax.f32 %v279, %v419
    %v428 = vld [vmem:[#allocation7] sm:$0xff]
    %v430 = vperm.slane %v428, 0
    %v431 = vperm.slane %v428, 1
    %v432 = vperm.slane %v428, 2
    %v433 = vperm.slane %v428, 3
    %v434 = vperm.slane %v428, 4
    %v435 = vperm.slane %v428, 5
    %v436 = vperm.slane %v428, 6
    %v444 = vadd.f32 %v421, %v430
    %v445 = vadd.f32 %v422, %v431
    %v446 = vadd.f32 %v423, %v432
    %v447 = vadd.f32 %v424, %v433
    %v448 = vadd.f32 %v425, %v434
    %v449 = vadd.f32 %v426, %v435
    %v450 = vadd.f32 %v427, %v436
    %v451 = vmax.f32 %v444, 0.0
    %v452 = vmax.f32 %v445, 0.0
    %v453 = vmax.f32 %v446, 0.0
    %v454 = vmax.f32 %v447, 0.0
    %v455 = vmax.f32 %v448, 0.0
    %v456 = vmax.f32 %v449, 0.0
    %v457 = vmax.f32 %v450, 0.0
    %v458 = vld [vmem:[#allocation8] sm:$0xff]
    %v459 = vld [vmem:[#allocation8 + $0x8] sm:$0xff]
    %v460 = vld [vmem:[#allocation8 + $0x10] sm:$0xff]
    %v461 = vld [vmem:[#allocation8 + $0x18] sm:$0xff]
    %v462 = vld [vmem:[#allocation8 + $0x20] sm:$0xff]
    %v463 = vld [vmem:[#allocation8 + $0x28] sm:$0xff]
    %v464 = vld [vmem:[#allocation8 + $0x30] sm:$0xff]
    %v465 = vld [vmem:[#allocation8 + $0x38] sm:$0xff]
    %v466 = vld [vmem:[#allocation8 + $0x40] sm:$0xff]
    %v467 = vld [vmem:[#allocation8 + $0x48] sm:$0xff]
    %v468 = vld [vmem:[#allocation8 + $0x50] sm:$0xff]
    %v469 = vld [vmem:[#allocation8 + $0x58] sm:$0xff]
    %v470 = vld [vmem:[#allocation8 + $0x60] sm:$0xff]
    %v471 = vld [vmem:[#allocation8 + $0x68] sm:$0xff]
    %v472 = vld [vmem:[#allocation8 + $0x70] sm:$0xff]
    %v473 = vld [vmem:[#allocation8 + $0x78] sm:$0xff]
    %v474 = vld [vmem:[#allocation8 + $0x80] sm:$0xff]
    %v475 = vld [vmem:[#allocation8 + $0x88] sm:$0xff]
    %v476 = vld [vmem:[#allocation8 + $0x90] sm:$0xff]
    %v477 = vld [vmem:[#allocation8 + $0x98] sm:$0xff]
    %v478 = vld [vmem:[#allocation8 + $0xa0] sm:$0xff]
    %v479 = vld [vmem:[#allocation8 + $0xa8] sm:$0xff]
    %v480 = vld [vmem:[#allocation8 + $0xb0] sm:$0xff]
    %v481 = vld [vmem:[#allocation8 + $0xb8] sm:$0xff]
    %v482 = vld [vmem:[#allocation8 + $0xc0] sm:$0xff]
    %v483 = vld [vmem:[#allocation8 + $0xc8] sm:$0xff]
    %v484 = vld [vmem:[#allocation8 + $0xd0] sm:$0xff]
    %v485 = vld [vmem:[#allocation8 + $0xd8] sm:$0xff]
    %v486 = vld [vmem:[#allocation8 + $0xe0] sm:$0xff]
    %v487 = vld [vmem:[#allocation8 + $0xe8] sm:$0xff]
    %v488 = vld [vmem:[#allocation8 + $0xf0] sm:$0xff]
    %v489 = vld [vmem:[#allocation8 + $0xf8] sm:$0xff]
    %v490 = vld [vmem:[#allocation8 + $0x100] sm:$0xff]
    %v491 = vld [vmem:[#allocation8 + $0x108] sm:$0xff]
    %v492 = vld [vmem:[#allocation8 + $0x110] sm:$0xff]
    %v493 = vld [vmem:[#allocation8 + $0x118] sm:$0xff]
    %v494 = vld [vmem:[#allocation8 + $0x120] sm:$0xff]
    %v495 = vld [vmem:[#allocation8 + $0x128] sm:$0xff]
    %v496 = vld [vmem:[#allocation8 + $0x130] sm:$0xff]
    %v497 = vld [vmem:[#allocation8 + $0x138] sm:$0xff]
    %v498 = vld [vmem:[#allocation8 + $0x140] sm:$0xff]
    %v499 = vld [vmem:[#allocation8 + $0x148] sm:$0xff]
    %v500 = vld [vmem:[#allocation8 + $0x150] sm:$0xff]
    %v501 = vld [vmem:[#allocation8 + $0x158] sm:$0xff]
    %v502 = vld [vmem:[#allocation8 + $0x160] sm:$0xff]
    %v503 = vld [vmem:[#allocation8 + $0x168] sm:$0xff]
    %v504 = vld [vmem:[#allocation8 + $0x170] sm:$0xff]
    %v505 = vld [vmem:[#allocation8 + $0x178] sm:$0xff]
    %v506 = vld [vmem:[#allocation8 + $0x180] sm:$0xff]
    %v507 = vld [vmem:[#allocation8 + $0x188] sm:$0xff]
    %v508 = vld [vmem:[#allocation8 + $0x190] sm:$0xff]
    %v509 = vld [vmem:[#allocation8 + $0x198] sm:$0xff]
    %v510 = vld [vmem:[#allocation8 + $0x1a0] sm:$0xff]
    %v511 = vld [vmem:[#allocation8 + $0x1a8] sm:$0xff]
    %v512 = vld [vmem:[#allocation8 + $0x1b0] sm:$0xff]
    %v513 = vld [vmem:[#allocation8 + $0x1b8] sm:$0xff]
    %v514 = vld [vmem:[#allocation8 + $0x1c0] sm:$0xff]
    %v515 = vld [vmem:[#allocation8 + $0x1c8] sm:$0xff]
    %v516 = vld [vmem:[#allocation8 + $0x1d0] sm:$0xff]
    %v517 = vld [vmem:[#allocation8 + $0x1d8] sm:$0xff]
    %v518 = vld [vmem:[#allocation8 + $0x1e0] sm:$0xff]
    %v519 = vld [vmem:[#allocation8 + $0x1e8] sm:$0xff]
    %v520 = vld [vmem:[#allocation8 + $0x1f0] sm:$0xff]
    %v521 = vld [vmem:[#allocation8 + $0x1f8] sm:$0xff]
    %v522 = vld [vmem:[#allocation8 + $0x200] sm:$0xff]
    %v523 = vld [vmem:[#allocation8 + $0x208] sm:$0xff]
    %v524 = vld [vmem:[#allocation8 + $0x210] sm:$0xff]
    %v525 = vld [vmem:[#allocation8 + $0x218] sm:$0xff]
    %v526 = vld [vmem:[#allocation8 + $0x220] sm:$0xff]
    %v527 = vld [vmem:[#allocation8 + $0x228] sm:$0xff]
    %v528 = vld [vmem:[#allocation8 + $0x230] sm:$0xff]
    %v529 = vld [vmem:[#allocation8 + $0x238] sm:$0xff]
    %v530 = vld [vmem:[#allocation8 + $0x240] sm:$0xff]
    %v531 = vld [vmem:[#allocation8 + $0x248] sm:$0xff]
    %v532 = vld [vmem:[#allocation8 + $0x250] sm:$0xff]
    %v533 = vld [vmem:[#allocation8 + $0x258] sm:$0xff]
    %v534 = vld [vmem:[#allocation8 + $0x260] sm:$0xff]
    %v535 = vld [vmem:[#allocation8 + $0x268] sm:$0xff]
    %v536 = vld [vmem:[#allocation8 + $0x270] sm:$0xff]
    %v537 = vld [vmem:[#allocation8 + $0x278] sm:$0xff]
    %v538 = vld [vmem:[#allocation8 + $0x280] sm:$0xff]
    %v539 = vld [vmem:[#allocation8 + $0x288] sm:$0xff]
    %v540 = vld [vmem:[#allocation8 + $0x290] sm:$0xff]
    %v541 = vld [vmem:[#allocation8 + $0x298] sm:$0xff]
    %v542 = vld [vmem:[#allocation8 + $0x2a0] sm:$0xff]
    %v543 = vld [vmem:[#allocation8 + $0x2a8] sm:$0xff]
    %v544 = vld [vmem:[#allocation8 + $0x2b0] sm:$0xff]
    %v545 = vld [vmem:[#allocation8 + $0x2b8] sm:$0xff]
    %v546 = vld [vmem:[#allocation8 + $0x2c0] sm:$0xff]
    %v547 = vld [vmem:[#allocation8 + $0x2c8] sm:$0xff]
    %v548 = vld [vmem:[#allocation8 + $0x2d0] sm:$0xff]
    %v549 = vld [vmem:[#allocation8 + $0x2d8] sm:$0xff]
    %v550 = vld [vmem:[#allocation8 + $0x2e0] sm:$0xff]
    %v551 = vld [vmem:[#allocation8 + $0x2e8] sm:$0xff]
    %v552 = vld [vmem:[#allocation8 + $0x2f0] sm:$0xff]
    %v553 = vld [vmem:[#allocation8 + $0x2f8] sm:$0xff]
    %v554 = vld [vmem:[#allocation8 + $0x300] sm:$0xff]
    %v555 = vld [vmem:[#allocation8 + $0x308] sm:$0xff]
    %v556 = vld [vmem:[#allocation8 + $0x310] sm:$0xff]
    %v557 = vld [vmem:[#allocation8 + $0x318] sm:$0xff]
    %v558 = vld [vmem:[#allocation8 + $0x320] sm:$0xff]
    %v559 = vld [vmem:[#allocation8 + $0x328] sm:$0xff]
    %v560 = vld [vmem:[#allocation8 + $0x330] sm:$0xff]
    %v561 = vld [vmem:[#allocation8 + $0x338] sm:$0xff]
    %v562 = vld [vmem:[#allocation8 + $0x340] sm:$0xff]
    %v563 = vld [vmem:[#allocation8 + $0x348] sm:$0xff]
    %v564 = vld [vmem:[#allocation8 + $0x350] sm:$0xff]
    %v565 = vld [vmem:[#allocation8 + $0x358] sm:$0xff]
    %v566 = vld [vmem:[#allocation8 + $0x360] sm:$0xff]
    %v567 = vld [vmem:[#allocation8 + $0x368] sm:$0xff]
    %v568 = vld [vmem:[#allocation8 + $0x370] sm:$0xff]
    %v569 = vld [vmem:[#allocation8 + $0x378] sm:$0xff]
    %v570 = vld [vmem:[%s4] sm:$0x1]
    %v572 = vperm.slane %v570, 0
    %574 = vmatpush.msra.mxu0 %v473
    %575 = vmatpush.msra.mxu0 %v472
    %576 = vmatpush.msra.mxu0 %v471
    %577 = vmatpush.msra.mxu0 %v470
    %578 = vmatpush.msra.mxu0 %v469
    %579 = vmatpush.msra.mxu0 %v468
    %580 = vmatpush.msra.mxu0 %v467
    %581 = vmatpush.msra.mxu0 %v466
    %582 = vmatpush.msra.mxu0 %v465
    %583 = vmatpush.msra.mxu0 %v464
    %584 = vmatpush.msra.mxu0 %v463
    %585 = vmatpush.msra.mxu0 %v462
    %586 = vmatpush.msra.mxu0 %v461
    %587 = vmatpush.msra.mxu0 %v460
    %588 = vmatpush.msra.mxu0 %v459
    %589 = vmatpush.msra.mxu0 %v458
    %590 = vmatmul.f32.gmra.mxu0 %v451
    %v591 = vpop.f32.mrf.mxu0
    %v592 = vadd.f32 %v572, %v591
    %593 = vdwg.mxu0
    %594 = vmatpush.msra.mxu0 %v489
    %595 = vmatpush.msra.mxu0 %v488
    %596 = vmatpush.msra.mxu0 %v487
    %597 = vmatpush.msra.mxu0 %v486
    %598 = vmatpush.msra.mxu0 %v485
    %599 = vmatpush.msra.mxu0 %v484
    %600 = vmatpush.msra.mxu0 %v483
    %601 = vmatpush.msra.mxu0 %v482
    %602 = vmatpush.msra.mxu0 %v481
    %603 = vmatpush.msra.mxu0 %v480
    %604 = vmatpush.msra.mxu0 %v479
    %605 = vmatpush.msra.mxu0 %v478
    %606 = vmatpush.msra.mxu0 %v477
    %607 = vmatpush.msra.mxu0 %v476
    %608 = vmatpush.msra.mxu0 %v475
    %609 = vmatpush.msra.mxu0 %v474
    %610 = vmatmul.f32.gmra.mxu0 %v452
    %v611 = vpop.f32.mrf.mxu0
    %v612 = vadd.f32 %v592, %v611
    %613 = vdwg.mxu0
    %614 = vmatpush.msra.mxu0 %v505
    %615 = vmatpush.msra.mxu0 %v504
    %616 = vmatpush.msra.mxu0 %v503
    %617 = vmatpush.msra.mxu0 %v502
    %618 = vmatpush.msra.mxu0 %v501
    %619 = vmatpush.msra.mxu0 %v500
    %620 = vmatpush.msra.mxu0 %v499
    %621 = vmatpush.msra.mxu0 %v498
    %622 = vmatpush.msra.mxu0 %v497
    %623 = vmatpush.msra.mxu0 %v496
    %624 = vmatpush.msra.mxu0 %v495
    %625 = vmatpush.msra.mxu0 %v494
    %626 = vmatpush.msra.mxu0 %v493
    %627 = vmatpush.msra.mxu0 %v492
    %628 = vmatpush.msra.mxu0 %v491
    %629 = vmatpush.msra.mxu0 %v490
    %630 = vmatmul.f32.gmra.mxu0 %v453
    %v631 = vpop.f32.mrf.mxu0
    %v632 = vadd.f32 %v612, %v631
    %633 = vdwg.mxu0
    %634 = vmatpush.msra.mxu0 %v521
    %635 = vmatpush.msra.mxu0 %v520
    %636 = vmatpush.msra.mxu0 %v519
    %637 = vmatpush.msra.mxu0 %v518
    %638 = vmatpush.msra.mxu0 %v517
    %639 = vmatpush.msra.mxu0 %v516
    %640 = vmatpush.msra.mxu0 %v515
    %641 = vmatpush.msra.mxu0 %v514
    %642 = vmatpush.msra.mxu0 %v513
    %643 = vmatpush.msra.mxu0 %v512
    %644 = vmatpush.msra.mxu0 %v511
    %645 = vmatpush.msra.mxu0 %v510
    %646 = vmatpush.msra.mxu0 %v509
    %647 = vmatpush.msra.mxu0 %v508
    %648 = vmatpush.msra.mxu0 %v507
    %649 = vmatpush.msra.mxu0 %v506
    %650 = vmatmul.f32.gmra.mxu0 %v454
    %v651 = vpop.f32.mrf.mxu0
    %v652 = vadd.f32 %v632, %v651
    %653 = vdwg.mxu0
    %654 = vmatpush.msra.mxu0 %v537
    %655 = vmatpush.msra.mxu0 %v536
    %656 = vmatpush.msra.mxu0 %v535
    %657 = vmatpush.msra.mxu0 %v534
    %658 = vmatpush.msra.mxu0 %v533
    %659 = vmatpush.msra.mxu0 %v532
    %660 = vmatpush.msra.mxu0 %v531
    %661 = vmatpush.msra.mxu0 %v530
    %662 = vmatpush.msra.mxu0 %v529
    %663 = vmatpush.msra.mxu0 %v528
    %664 = vmatpush.msra.mxu0 %v527
    %665 = vmatpush.msra.mxu0 %v526
    %666 = vmatpush.msra.mxu0 %v525
    %667 = vmatpush.msra.mxu0 %v524
    %668 = vmatpush.msra.mxu0 %v523
    %669 = vmatpush.msra.mxu0 %v522
    %670 = vmatmul.f32.gmra.mxu0 %v455
    %v671 = vpop.f32.mrf.mxu0
    %v672 = vadd.f32 %v652, %v671
    %673 = vdwg.mxu0
    %674 = vmatpush.msra.mxu0 %v553
    %675 = vmatpush.msra.mxu0 %v552
    %676 = vmatpush.msra.mxu0 %v551
    %677 = vmatpush.msra.mxu0 %v550
    %678 = vmatpush.msra.mxu0 %v549
    %679 = vmatpush.msra.mxu0 %v548
    %680 = vmatpush.msra.mxu0 %v547
    %681 = vmatpush.msra.mxu0 %v546
    %682 = vmatpush.msra.mxu0 %v545
    %683 = vmatpush.msra.mxu0 %v544
    %684 = vmatpush.msra.mxu0 %v543
    %685 = vmatpush.msra.mxu0 %v542
    %686 = vmatpush.msra.mxu0 %v541
    %687 = vmatpush.msra.mxu0 %v540
    %688 = vmatpush.msra.mxu0 %v539
    %689 = vmatpush.msra.mxu0 %v538
    %690 = vmatmul.f32.gmra.mxu0 %v456
    %v691 = vpop.f32.mrf.mxu0
    %v692 = vadd.f32 %v672, %v691
    %693 = vdwg.mxu0
    %694 = vmatpush.msra.mxu0 %v569
    %695 = vmatpush.msra.mxu0 %v568
    %696 = vmatpush.msra.mxu0 %v567
    %697 = vmatpush.msra.mxu0 %v566
    %698 = vmatpush.msra.mxu0 %v565
    %699 = vmatpush.msra.mxu0 %v564
    %700 = vmatpush.msra.mxu0 %v563
    %701 = vmatpush.msra.mxu0 %v562
    %702 = vmatpush.msra.mxu0 %v561
    %703 = vmatpush.msra.mxu0 %v560
    %704 = vmatpush.msra.mxu0 %v559
    %705 = vmatpush.msra.mxu0 %v558
    %706 = vmatpush.msra.mxu0 %v557
    %707 = vmatpush.msra.mxu0 %v556
    %708 = vmatpush.msra.mxu0 %v555
    %709 = vmatpush.msra.mxu0 %v554
    %710 = vmatmul.f32.gmra.mxu0 %v457
    %v711 = vpop.f32.mrf.mxu0
    %v712 = vadd.f32 %v692, %v711
    %713 = vdwg.mxu0
    %714 = vst [vmem:[#allocation10] sm:$0xff] %v712
    // Predicated region
    $region38: #{tpu_custom_call.1} parent=1 // pred_check
      _
    $region39: #{tpu_custom_call.1} parent=1 // pred_check_branch
      %716 = sbr.rel (0) target = $region41
    $region40: #{tpu_custom_call.1} parent=1 // pred_region
      %718 = vsyncadd [#allocation4], 0
      %s720 = sshll.u32 [#allocation10], 4
      %s721 = int_to_ptr.vmem [resolvable:$true] %s720
      %s722 = sshll.u32 %s5, 4
      %s723 = int_to_ptr.hbm [resolvable:$true] %s722
      %725 = dma.vmem_to_hbm [thread:$0]  %s721, 128, %s723, [#allocation4]
    $region41: #{tpu_custom_call.1} parent=1 // pred_fallthru
      _
    // Predicated region
    $region42: #{tpu_custom_call.1} parent=1 // pred_check
      _
    $region43: #{tpu_custom_call.1} parent=1 // pred_check_branch
      %727 = sbr.rel (0) target = $region45
    $region44: #{tpu_custom_call.1} parent=1 // pred_region
      %729 = dma.done [#allocation4], 128
    $region45: #{tpu_custom_call.1} parent=1 // pred_fallthru
      _
    %730 = vsyncpa [#allocation3], 1
    %731 = vsyncpa [#allocation6], 1
    %732 = vsyncpa [#allocation9], 1
    %733 = vsyncpa [#allocation4], 1

</llo_original>
